<compile_context>
chip_gen: v7x
topology: tpu7x:2x2x1
jax: 0.10.0
libtpu: 0.0.40
codegen_flags: <defaults>
</compile_context>

<pallas_src>
import math

import jax
import jax.numpy as jnp
from jax import lax
from jax.experimental import pallas as pl
from jax.experimental.pallas import tpu as pltpu


def householder_kernel(v_ref, q_ref, vp_ref, coef_ref):
    # v_ref   : (1, K, dim, hpb)  compact reflector vectors for this head group
    # q_ref   : (hpb, dim, dim)   output, q_ref[h] = Q_{group*hpb + h}
    # vp_ref  : (K, dim, lanes)   scratch: raw v lane-replicated per head block
    # coef_ref: (K, 1, lanes)     scratch: 2 / ||v||^2, lane-replicated
    _, k, dim, hpb = v_ref.shape
    lanes = hpb * dim

    # Hoisted lane bookkeeping (computed once, pure VPU int ops).
    row = lax.broadcasted_iota(jnp.int32, (dim, lanes), 0)
    col = lax.broadcasted_iota(jnp.int32, (dim, lanes), 1)
    if (dim & (dim - 1)) == 0:                    # power-of-two fast path
        col_in_head = col & (dim - 1)
        head_of_lane = col >> (dim.bit_length() - 1)
    else:
        col_in_head = col % dim
        head_of_lane = col // dim

    # ---- Hoisted pack + normalization (off the serial reflection chain) ----
    # vp[i, j, h*dim + c] = vs[h, i, j];  coef[i, 0, h*dim + c] = 2 / ||vs[h, i]||^2
    for i in range(k):
        vci = v_ref[0, i].astype(jnp.float32)                  # (dim, hpb)
        vp = jnp.zeros((dim, lanes), jnp.float32)
        for h in range(hpb):                                   # static, small
            colv = jnp.broadcast_to(vci[:, h:h + 1], (dim, lanes))
            vp = vp + jnp.where(head_of_lane == h, colv, 0.0)
        n2 = jnp.sum(vp * vp, axis=0, keepdims=True)           # (1, lanes)
        coef_ref[i] = 2.0 * pl.reciprocal(n2, approx=False)    # EUP, hoisted
        vp_ref[i] = vp

    # ---- Q starts as per-head identity blocks packed along the lane axis ----
    q = (row == col_in_head).astype(jnp.float32)               # (dim, lanes)

    # ---- K rank-1 Householder updates: Q <- Q - v * (coef * (v^T Q)) --------
    def reflect(i, q):
        vp = vp_ref[i]                                         # re-read from VMEM
        w = jnp.sum(vp * q, axis=0, keepdims=True)             # (1, lanes)
        return q - vp * (coef_ref[i] * w)

    if k >= 16:
        q = lax.fori_loop(0, k, reflect, q, unroll=2)
    else:
        for i in range(k):                                     # serial chain, tiny K
            q = reflect(i, q)

    # ---- Unpack straight into the (num_heads, dim, dim) output layout -------
    for h in range(hpb):
        q_ref[h] = q[:, h * dim:(h + 1) * dim]


def _choose_block(num_heads: int, dim: int, k: int):
    """Return (heads_per_block, padded_total_heads)."""
    budget = 8 * 1024 * 1024        # conservative: inside every gen's default scoped VMEM

    def fits(hpb):
        lanes = hpb * dim
        in_blk = k * dim * hpb * 4
        out_blk = hpb * dim * dim * 4
        scratch = (k * dim * lanes + k * 8 * lanes) * 4        # vp + coef (sublane pad)
        return 2 * (in_blk + out_blk) + scratch <= budget

    def pick(h_total):
        cands = [h for h in range(1, h_total + 1)
                 if h_total % h == 0 and (h * dim) % 128 == 0 and fits(h)]
        if not cands:
            return None
        best = max(cands)                                      # amortize per-step overhead
        if h_total // best == 1:                               # keep >=2 groups (v7x megacore)
            multi = [h for h in cands if h_total // h >= 2]
            if multi:
                best = max(multi)
        return best

    hpb = pick(num_heads)
    if hpb is not None:
        return hpb, num_heads
    # Pad heads so a 128-lane-aligned block exists (dummy heads dropped after the call).
    m = 128 // math.gcd(dim, 128)
    h_total = ((num_heads + m - 1) // m) * m
    hpb = pick(h_total)
    if hpb is None:                                            # degenerate shapes: unaligned fallback
        return 1, num_heads
    return hpb, h_total


@jax.jit
def householder_per_head(vs):
    """vs: (num_heads, K, dim) float32 -> Q: (num_heads, dim, dim) float32."""
    num_heads, k, dim = vs.shape
    hpb, h_total = _choose_block(num_heads, dim, k)
    if h_total != num_heads:
        pad = jnp.ones((h_total - num_heads, k, dim), vs.dtype)   # nonzero -> finite norms
        vs_full = jnp.concatenate([vs, pad], axis=0)
    else:
        vs_full = vs
    num_groups = h_total // hpb
    lanes = hpb * dim

    # Compact per-group layout (tiny copy, no dim-x replication):
    #   v4[g, i, j, h] = vs[g*hpb + h, i, j]
    v4 = jnp.transpose(vs_full.reshape(num_groups, hpb, k, dim), (0, 2, 3, 1))
    v4 = v4.astype(jnp.float32)

    out = pl.pallas_call(
        householder_kernel,
        out_shape=jax.ShapeDtypeStruct((h_total, dim, dim), jnp.float32),
        grid=(num_groups,),
        in_specs=[pl.BlockSpec((1, k, dim, hpb), lambda g: (g, 0, 0, 0))],
        out_specs=pl.BlockSpec((hpb, dim, dim), lambda g: (g, 0, 0)),
        scratch_shapes=[pltpu.VMEM((k, dim, lanes), jnp.float32),
                        pltpu.VMEM((k, 1, lanes), jnp.float32)],
        compiler_params=pltpu.CompilerParams(
            dimension_semantics=("parallel",)),
    )(v4)
    if h_total != num_heads:
        out = out[:num_heads]
    return out


def householder_ref(vs):
    """Pure-JAX reference mirroring the PyTorch forward."""
    num_heads, k, dim = vs.shape
    eye = jnp.eye(dim, dtype=jnp.float32)
    q = jnp.broadcast_to(eye, (num_heads, dim, dim))
    for i in range(k):
        v = vs[:, i, :]
        v = v / jnp.linalg.norm(v, axis=-1, keepdims=True)
        h = eye[None] - 2.0 * jnp.einsum("hi,hj->hij", v, v)
        q = jnp.einsum("hij,hjk->hik", h, q)
    return q


if __name__ == "__main__":
    num_heads = 4
    dim = 32
    num_reflections = 4

    key = jax.random.PRNGKey(0)
    vs = jax.random.normal(key, (num_heads, num_reflections, dim), dtype=jnp.float32)

    q_kernel = householder_per_head(vs)
    jax.block_until_ready(q_kernel)

    q_ref = householder_ref(vs)
    assert q_kernel.shape == (num_heads, dim, dim)
    assert q_kernel.dtype == jnp.float32
    assert jnp.allclose(q_kernel, q_ref, atol=1e-4, rtol=1e-4)

    print("KERNEL_OK")
</pallas_src>

<mosaic_0001>
module attributes {stable_mosaic.version = 11 : i64} {
  func.func @householder_kernel(%arg0: i32, %arg1: memref<1x4x32x4xf32, #tpu.memory_space<vmem>>, %arg2: memref<4x32x32xf32, #tpu.memory_space<vmem>>, %arg3: memref<4x32x128xf32, #tpu.memory_space<vmem>>, %arg4: memref<4x1x128xf32, #tpu.memory_space<vmem>>) attributes {dimension_semantics = [#tpu.dimension_semantics<parallel>], iteration_bounds = array<i64: 1>, scalar_prefetch = 0 : i64, scratch_operands = 2 : i64, tpu.core_type = #tpu.core_type<tc>, window_params = [{transform_indices = @transform_0, window_bounds = array<i64: 1, 4, 32, 4>}, {transform_indices = @transform_1, window_bounds = array<i64: 4, 32, 32>}]} {
    %0 = tpu.iota {dimensions = array<i32: 0>} : vector<32x128xi32>
    %1 = tpu.iota {dimensions = array<i32: 1>} : vector<32x128xi32>
    %c31_i32 = arith.constant 31 : i32
    %2 = vector.broadcast %c31_i32 : i32 to vector<32x128xi32>
    %3 = arith.andi %1, %2 : vector<32x128xi32>
    %c5_i32 = arith.constant 5 : i32
    %4 = vector.broadcast %c5_i32 : i32 to vector<32x128xi32>
    %5 = arith.shrsi %1, %4 : vector<32x128xi32>
    %c0 = arith.constant 0 : index
    %c0_0 = arith.constant 0 : index
    %c0_1 = arith.constant 0 : index
    %c0_2 = arith.constant 0 : index
    %6 = vector.load %arg1[%c0, %c0_0, %c0_1, %c0_2] : memref<1x4x32x4xf32, #tpu.memory_space<vmem>>, vector<1x1x32x4xf32>
    %7 = vector.shape_cast %6 : vector<1x1x32x4xf32> to vector<32x4xf32>
    %cst = arith.constant 0.000000e+00 : f32
    %8 = vector.broadcast %cst : f32 to vector<32x128xf32>
    %9 = vector.extract_strided_slice %7 {offsets = [0, 0], sizes = [32, 1], strides = [1, 1]} : vector<32x4xf32> to vector<32x1xf32>
    %10 = vector.shape_cast %9 : vector<32x1xf32> to vector<32x1xf32>
    %11 = vector.broadcast %10 : vector<32x1xf32> to vector<32x128xf32>
    %c0_i32 = arith.constant 0 : i32
    %12 = vector.broadcast %c0_i32 : i32 to vector<32x128xi32>
    %13 = arith.cmpi eq, %5, %12 : vector<32x128xi32>
    %cst_3 = arith.constant 0.000000e+00 : f32
    %14 = vector.broadcast %cst_3 : f32 to vector<32x128xf32>
    %15 = arith.select %13, %11, %14 : vector<32x128xi1>, vector<32x128xf32>
    %16 = arith.addf %8, %15 : vector<32x128xf32>
    %17 = vector.extract_strided_slice %7 {offsets = [0, 1], sizes = [32, 1], strides = [1, 1]} : vector<32x4xf32> to vector<32x1xf32>
    %18 = vector.shape_cast %17 : vector<32x1xf32> to vector<32x1xf32>
    %19 = vector.broadcast %18 : vector<32x1xf32> to vector<32x128xf32>
    %c1_i32 = arith.constant 1 : i32
    %20 = vector.broadcast %c1_i32 : i32 to vector<32x128xi32>
    %21 = arith.cmpi eq, %5, %20 : vector<32x128xi32>
    %cst_4 = arith.constant 0.000000e+00 : f32
    %22 = vector.broadcast %cst_4 : f32 to vector<32x128xf32>
    %23 = arith.select %21, %19, %22 : vector<32x128xi1>, vector<32x128xf32>
    %24 = arith.addf %16, %23 : vector<32x128xf32>
    %25 = vector.extract_strided_slice %7 {offsets = [0, 2], sizes = [32, 1], strides = [1, 1]} : vector<32x4xf32> to vector<32x1xf32>
    %26 = vector.shape_cast %25 : vector<32x1xf32> to vector<32x1xf32>
    %27 = vector.broadcast %26 : vector<32x1xf32> to vector<32x128xf32>
    %c2_i32 = arith.constant 2 : i32
    %28 = vector.broadcast %c2_i32 : i32 to vector<32x128xi32>
    %29 = arith.cmpi eq, %5, %28 : vector<32x128xi32>
    %cst_5 = arith.constant 0.000000e+00 : f32
    %30 = vector.broadcast %cst_5 : f32 to vector<32x128xf32>
    %31 = arith.select %29, %27, %30 : vector<32x128xi1>, vector<32x128xf32>
    %32 = arith.addf %24, %31 : vector<32x128xf32>
    %33 = vector.extract_strided_slice %7 {offsets = [0, 3], sizes = [32, 1], strides = [1, 1]} : vector<32x4xf32> to vector<32x1xf32>
    %34 = vector.shape_cast %33 : vector<32x1xf32> to vector<32x1xf32>
    %35 = vector.broadcast %34 : vector<32x1xf32> to vector<32x128xf32>
    %c3_i32 = arith.constant 3 : i32
    %36 = vector.broadcast %c3_i32 : i32 to vector<32x128xi32>
    %37 = arith.cmpi eq, %5, %36 : vector<32x128xi32>
    %cst_6 = arith.constant 0.000000e+00 : f32
    %38 = vector.broadcast %cst_6 : f32 to vector<32x128xf32>
    %39 = arith.select %37, %35, %38 : vector<32x128xi1>, vector<32x128xf32>
    %40 = arith.addf %32, %39 : vector<32x128xf32>
    %41 = arith.mulf %40, %40 : vector<32x128xf32>
    %cst_7 = arith.constant dense<0.000000e+00> : vector<128xf32>
    %42 = vector.multi_reduction <add>, %41, %cst_7 [0] : vector<32x128xf32> to vector<128xf32>
    %43 = vector.shape_cast %42 : vector<128xf32> to vector<1x128xf32>
    %44 = tpu.reciprocal %43 : vector<1x128xf32> -> vector<1x128xf32>
    %cst_8 = arith.constant 2.000000e+00 : f32
    %45 = vector.broadcast %cst_8 : f32 to vector<1x128xf32>
    %46 = arith.mulf %45, %44 : vector<1x128xf32>
    %c0_9 = arith.constant 0 : index
    %c0_10 = arith.constant 0 : index
    %c0_11 = arith.constant 0 : index
    %47 = vector.load %arg4[%c0_9, %c0_10, %c0_11] : memref<4x1x128xf32, #tpu.memory_space<vmem>>, vector<1x1x128xf32>
    %48 = vector.shape_cast %47 : vector<1x1x128xf32> to vector<1x128xf32>
    %49 = vector.shape_cast %46 : vector<1x128xf32> to vector<1x1x128xf32>
    tpu.vector_store %arg4[%c0_9, %c0_10, %c0_11], %49 {strides = array<i32>} : memref<4x1x128xf32, #tpu.memory_space<vmem>>, vector<1x1x128xf32>,
    %c0_12 = arith.constant 0 : index
    %c0_13 = arith.constant 0 : index
    %c0_14 = arith.constant 0 : index
    %50 = vector.load %arg3[%c0_12, %c0_13, %c0_14] : memref<4x32x128xf32, #tpu.memory_space<vmem>>, vector<1x32x128xf32>
    %51 = vector.shape_cast %50 : vector<1x32x128xf32> to vector<32x128xf32>
    %52 = vector.shape_cast %40 : vector<32x128xf32> to vector<1x32x128xf32>
    tpu.vector_store %arg3[%c0_12, %c0_13, %c0_14], %52 {strides = array<i32>} : memref<4x32x128xf32, #tpu.memory_space<vmem>>, vector<1x32x128xf32>,
    %c0_15 = arith.constant 0 : index
    %c1 = arith.constant 1 : index
    %c0_16 = arith.constant 0 : index
    %c0_17 = arith.constant 0 : index
    %53 = vector.load %arg1[%c0_15, %c1, %c0_16, %c0_17] : memref<1x4x32x4xf32, #tpu.memory_space<vmem>>, vector<1x1x32x4xf32>
    %54 = vector.shape_cast %53 : vector<1x1x32x4xf32> to vector<32x4xf32>
    %cst_18 = arith.constant 0.000000e+00 : f32
    %55 = vector.broadcast %cst_18 : f32 to vector<32x128xf32>
    %56 = vector.extract_strided_slice %54 {offsets = [0, 0], sizes = [32, 1], strides = [1, 1]} : vector<32x4xf32> to vector<32x1xf32>
    %57 = vector.shape_cast %56 : vector<32x1xf32> to vector<32x1xf32>
    %58 = vector.broadcast %57 : vector<32x1xf32> to vector<32x128xf32>
    %c0_i32_19 = arith.constant 0 : i32
    %59 = vector.broadcast %c0_i32_19 : i32 to vector<32x128xi32>
    %60 = arith.cmpi eq, %5, %59 : vector<32x128xi32>
    %cst_20 = arith.constant 0.000000e+00 : f32
    %61 = vector.broadcast %cst_20 : f32 to vector<32x128xf32>
    %62 = arith.select %60, %58, %61 : vector<32x128xi1>, vector<32x128xf32>
    %63 = arith.addf %55, %62 : vector<32x128xf32>
    %64 = vector.extract_strided_slice %54 {offsets = [0, 1], sizes = [32, 1], strides = [1, 1]} : vector<32x4xf32> to vector<32x1xf32>
    %65 = vector.shape_cast %64 : vector<32x1xf32> to vector<32x1xf32>
    %66 = vector.broadcast %65 : vector<32x1xf32> to vector<32x128xf32>
    %c1_i32_21 = arith.constant 1 : i32
    %67 = vector.broadcast %c1_i32_21 : i32 to vector<32x128xi32>
    %68 = arith.cmpi eq, %5, %67 : vector<32x128xi32>
    %cst_22 = arith.constant 0.000000e+00 : f32
    %69 = vector.broadcast %cst_22 : f32 to vector<32x128xf32>
    %70 = arith.select %68, %66, %69 : vector<32x128xi1>, vector<32x128xf32>
    %71 = arith.addf %63, %70 : vector<32x128xf32>
    %72 = vector.extract_strided_slice %54 {offsets = [0, 2], sizes = [32, 1], strides = [1, 1]} : vector<32x4xf32> to vector<32x1xf32>
    %73 = vector.shape_cast %72 : vector<32x1xf32> to vector<32x1xf32>
    %74 = vector.broadcast %73 : vector<32x1xf32> to vector<32x128xf32>
    %c2_i32_23 = arith.constant 2 : i32
    %75 = vector.broadcast %c2_i32_23 : i32 to vector<32x128xi32>
    %76 = arith.cmpi eq, %5, %75 : vector<32x128xi32>
    %cst_24 = arith.constant 0.000000e+00 : f32
    %77 = vector.broadcast %cst_24 : f32 to vector<32x128xf32>
    %78 = arith.select %76, %74, %77 : vector<32x128xi1>, vector<32x128xf32>
    %79 = arith.addf %71, %78 : vector<32x128xf32>
    %80 = vector.extract_strided_slice %54 {offsets = [0, 3], sizes = [32, 1], strides = [1, 1]} : vector<32x4xf32> to vector<32x1xf32>
    %81 = vector.shape_cast %80 : vector<32x1xf32> to vector<32x1xf32>
    %82 = vector.broadcast %81 : vector<32x1xf32> to vector<32x128xf32>
    %c3_i32_25 = arith.constant 3 : i32
    %83 = vector.broadcast %c3_i32_25 : i32 to vector<32x128xi32>
    %84 = arith.cmpi eq, %5, %83 : vector<32x128xi32>
    %cst_26 = arith.constant 0.000000e+00 : f32
    %85 = vector.broadcast %cst_26 : f32 to vector<32x128xf32>
    %86 = arith.select %84, %82, %85 : vector<32x128xi1>, vector<32x128xf32>
    %87 = arith.addf %79, %86 : vector<32x128xf32>
    %88 = arith.mulf %87, %87 : vector<32x128xf32>
    %cst_27 = arith.constant dense<0.000000e+00> : vector<128xf32>
    %89 = vector.multi_reduction <add>, %88, %cst_27 [0] : vector<32x128xf32> to vector<128xf32>
    %90 = vector.shape_cast %89 : vector<128xf32> to vector<1x128xf32>
    %91 = tpu.reciprocal %90 : vector<1x128xf32> -> vector<1x128xf32>
    %cst_28 = arith.constant 2.000000e+00 : f32
    %92 = vector.broadcast %cst_28 : f32 to vector<1x128xf32>
    %93 = arith.mulf %92, %91 : vector<1x128xf32>
    %c1_29 = arith.constant 1 : index
    %c0_30 = arith.constant 0 : index
    %c0_31 = arith.constant 0 : index
    %94 = vector.load %arg4[%c1_29, %c0_30, %c0_31] : memref<4x1x128xf32, #tpu.memory_space<vmem>>, vector<1x1x128xf32>
    %95 = vector.shape_cast %94 : vector<1x1x128xf32> to vector<1x128xf32>
    %96 = vector.shape_cast %93 : vector<1x128xf32> to vector<1x1x128xf32>
    tpu.vector_store %arg4[%c1_29, %c0_30, %c0_31], %96 {strides = array<i32>} : memref<4x1x128xf32, #tpu.memory_space<vmem>>, vector<1x1x128xf32>,
    %c1_32 = arith.constant 1 : index
    %c0_33 = arith.constant 0 : index
    %c0_34 = arith.constant 0 : index
    %97 = vector.load %arg3[%c1_32, %c0_33, %c0_34] : memref<4x32x128xf32, #tpu.memory_space<vmem>>, vector<1x32x128xf32>
    %98 = vector.shape_cast %97 : vector<1x32x128xf32> to vector<32x128xf32>
    %99 = vector.shape_cast %87 : vector<32x128xf32> to vector<1x32x128xf32>
    tpu.vector_store %arg3[%c1_32, %c0_33, %c0_34], %99 {strides = array<i32>} : memref<4x32x128xf32, #tpu.memory_space<vmem>>, vector<1x32x128xf32>,
    %c0_35 = arith.constant 0 : index
    %c2 = arith.constant 2 : index
    %c0_36 = arith.constant 0 : index
    %c0_37 = arith.constant 0 : index
    %100 = vector.load %arg1[%c0_35, %c2, %c0_36, %c0_37] : memref<1x4x32x4xf32, #tpu.memory_space<vmem>>, vector<1x1x32x4xf32>
    %101 = vector.shape_cast %100 : vector<1x1x32x4xf32> to vector<32x4xf32>
    %cst_38 = arith.constant 0.000000e+00 : f32
    %102 = vector.broadcast %cst_38 : f32 to vector<32x128xf32>
    %103 = vector.extract_strided_slice %101 {offsets = [0, 0], sizes = [32, 1], strides = [1, 1]} : vector<32x4xf32> to vector<32x1xf32>
    %104 = vector.shape_cast %103 : vector<32x1xf32> to vector<32x1xf32>
    %105 = vector.broadcast %104 : vector<32x1xf32> to vector<32x128xf32>
    %c0_i32_39 = arith.constant 0 : i32
    %106 = vector.broadcast %c0_i32_39 : i32 to vector<32x128xi32>
    %107 = arith.cmpi eq, %5, %106 : vector<32x128xi32>
    %cst_40 = arith.constant 0.000000e+00 : f32
    %108 = vector.broadcast %cst_40 : f32 to vector<32x128xf32>
    %109 = arith.select %107, %105, %108 : vector<32x128xi1>, vector<32x128xf32>
    %110 = arith.addf %102, %109 : vector<32x128xf32>
    %111 = vector.extract_strided_slice %101 {offsets = [0, 1], sizes = [32, 1], strides = [1, 1]} : vector<32x4xf32> to vector<32x1xf32>
    %112 = vector.shape_cast %111 : vector<32x1xf32> to vector<32x1xf32>
    %113 = vector.broadcast %112 : vector<32x1xf32> to vector<32x128xf32>
    %c1_i32_41 = arith.constant 1 : i32
    %114 = vector.broadcast %c1_i32_41 : i32 to vector<32x128xi32>
    %115 = arith.cmpi eq, %5, %114 : vector<32x128xi32>
    %cst_42 = arith.constant 0.000000e+00 : f32
    %116 = vector.broadcast %cst_42 : f32 to vector<32x128xf32>
    %117 = arith.select %115, %113, %116 : vector<32x128xi1>, vector<32x128xf32>
    %118 = arith.addf %110, %117 : vector<32x128xf32>
    %119 = vector.extract_strided_slice %101 {offsets = [0, 2], sizes = [32, 1], strides = [1, 1]} : vector<32x4xf32> to vector<32x1xf32>
    %120 = vector.shape_cast %119 : vector<32x1xf32> to vector<32x1xf32>
    %121 = vector.broadcast %120 : vector<32x1xf32> to vector<32x128xf32>
    %c2_i32_43 = arith.constant 2 : i32
    %122 = vector.broadcast %c2_i32_43 : i32 to vector<32x128xi32>
    %123 = arith.cmpi eq, %5, %122 : vector<32x128xi32>
    %cst_44 = arith.constant 0.000000e+00 : f32
    %124 = vector.broadcast %cst_44 : f32 to vector<32x128xf32>
    %125 = arith.select %123, %121, %124 : vector<32x128xi1>, vector<32x128xf32>
    %126 = arith.addf %118, %125 : vector<32x128xf32>
    %127 = vector.extract_strided_slice %101 {offsets = [0, 3], sizes = [32, 1], strides = [1, 1]} : vector<32x4xf32> to vector<32x1xf32>
    %128 = vector.shape_cast %127 : vector<32x1xf32> to vector<32x1xf32>
    %129 = vector.broadcast %128 : vector<32x1xf32> to vector<32x128xf32>
    %c3_i32_45 = arith.constant 3 : i32
    %130 = vector.broadcast %c3_i32_45 : i32 to vector<32x128xi32>
    %131 = arith.cmpi eq, %5, %130 : vector<32x128xi32>
    %cst_46 = arith.constant 0.000000e+00 : f32
    %132 = vector.broadcast %cst_46 : f32 to vector<32x128xf32>
    %133 = arith.select %131, %129, %132 : vector<32x128xi1>, vector<32x128xf32>
    %134 = arith.addf %126, %133 : vector<32x128xf32>
    %135 = arith.mulf %134, %134 : vector<32x128xf32>
    %cst_47 = arith.constant dense<0.000000e+00> : vector<128xf32>
    %136 = vector.multi_reduction <add>, %135, %cst_47 [0] : vector<32x128xf32> to vector<128xf32>
    %137 = vector.shape_cast %136 : vector<128xf32> to vector<1x128xf32>
    %138 = tpu.reciprocal %137 : vector<1x128xf32> -> vector<1x128xf32>
    %cst_48 = arith.constant 2.000000e+00 : f32
    %139 = vector.broadcast %cst_48 : f32 to vector<1x128xf32>
    %140 = arith.mulf %139, %138 : vector<1x128xf32>
    %c2_49 = arith.constant 2 : index
    %c0_50 = arith.constant 0 : index
    %c0_51 = arith.constant 0 : index
    %141 = vector.load %arg4[%c2_49, %c0_50, %c0_51] : memref<4x1x128xf32, #tpu.memory_space<vmem>>, vector<1x1x128xf32>
    %142 = vector.shape_cast %141 : vector<1x1x128xf32> to vector<1x128xf32>
    %143 = vector.shape_cast %140 : vector<1x128xf32> to vector<1x1x128xf32>
    tpu.vector_store %arg4[%c2_49, %c0_50, %c0_51], %143 {strides = array<i32>} : memref<4x1x128xf32, #tpu.memory_space<vmem>>, vector<1x1x128xf32>,
    %c2_52 = arith.constant 2 : index
    %c0_53 = arith.constant 0 : index
    %c0_54 = arith.constant 0 : index
    %144 = vector.load %arg3[%c2_52, %c0_53, %c0_54] : memref<4x32x128xf32, #tpu.memory_space<vmem>>, vector<1x32x128xf32>
    %145 = vector.shape_cast %144 : vector<1x32x128xf32> to vector<32x128xf32>
    %146 = vector.shape_cast %134 : vector<32x128xf32> to vector<1x32x128xf32>
    tpu.vector_store %arg3[%c2_52, %c0_53, %c0_54], %146 {strides = array<i32>} : memref<4x32x128xf32, #tpu.memory_space<vmem>>, vector<1x32x128xf32>,
    %c0_55 = arith.constant 0 : index
    %c3 = arith.constant 3 : index
    %c0_56 = arith.constant 0 : index
    %c0_57 = arith.constant 0 : index
    %147 = vector.load %arg1[%c0_55, %c3, %c0_56, %c0_57] : memref<1x4x32x4xf32, #tpu.memory_space<vmem>>, vector<1x1x32x4xf32>
    %148 = vector.shape_cast %147 : vector<1x1x32x4xf32> to vector<32x4xf32>
    %cst_58 = arith.constant 0.000000e+00 : f32
    %149 = vector.broadcast %cst_58 : f32 to vector<32x128xf32>
    %150 = vector.extract_strided_slice %148 {offsets = [0, 0], sizes = [32, 1], strides = [1, 1]} : vector<32x4xf32> to vector<32x1xf32>
    %151 = vector.shape_cast %150 : vector<32x1xf32> to vector<32x1xf32>
    %152 = vector.broadcast %151 : vector<32x1xf32> to vector<32x128xf32>
    %c0_i32_59 = arith.constant 0 : i32
    %153 = vector.broadcast %c0_i32_59 : i32 to vector<32x128xi32>
    %154 = arith.cmpi eq, %5, %153 : vector<32x128xi32>
    %cst_60 = arith.constant 0.000000e+00 : f32
    %155 = vector.broadcast %cst_60 : f32 to vector<32x128xf32>
    %156 = arith.select %154, %152, %155 : vector<32x128xi1>, vector<32x128xf32>
    %157 = arith.addf %149, %156 : vector<32x128xf32>
    %158 = vector.extract_strided_slice %148 {offsets = [0, 1], sizes = [32, 1], strides = [1, 1]} : vector<32x4xf32> to vector<32x1xf32>
    %159 = vector.shape_cast %158 : vector<32x1xf32> to vector<32x1xf32>
    %160 = vector.broadcast %159 : vector<32x1xf32> to vector<32x128xf32>
    %c1_i32_61 = arith.constant 1 : i32
    %161 = vector.broadcast %c1_i32_61 : i32 to vector<32x128xi32>
    %162 = arith.cmpi eq, %5, %161 : vector<32x128xi32>
    %cst_62 = arith.constant 0.000000e+00 : f32
    %163 = vector.broadcast %cst_62 : f32 to vector<32x128xf32>
    %164 = arith.select %162, %160, %163 : vector<32x128xi1>, vector<32x128xf32>
    %165 = arith.addf %157, %164 : vector<32x128xf32>
    %166 = vector.extract_strided_slice %148 {offsets = [0, 2], sizes = [32, 1], strides = [1, 1]} : vector<32x4xf32> to vector<32x1xf32>
    %167 = vector.shape_cast %166 : vector<32x1xf32> to vector<32x1xf32>
    %168 = vector.broadcast %167 : vector<32x1xf32> to vector<32x128xf32>
    %c2_i32_63 = arith.constant 2 : i32
    %169 = vector.broadcast %c2_i32_63 : i32 to vector<32x128xi32>
    %170 = arith.cmpi eq, %5, %169 : vector<32x128xi32>
    %cst_64 = arith.constant 0.000000e+00 : f32
    %171 = vector.broadcast %cst_64 : f32 to vector<32x128xf32>
    %172 = arith.select %170, %168, %171 : vector<32x128xi1>, vector<32x128xf32>
    %173 = arith.addf %165, %172 : vector<32x128xf32>
    %174 = vector.extract_strided_slice %148 {offsets = [0, 3], sizes = [32, 1], strides = [1, 1]} : vector<32x4xf32> to vector<32x1xf32>
    %175 = vector.shape_cast %174 : vector<32x1xf32> to vector<32x1xf32>
    %176 = vector.broadcast %175 : vector<32x1xf32> to vector<32x128xf32>
    %c3_i32_65 = arith.constant 3 : i32
    %177 = vector.broadcast %c3_i32_65 : i32 to vector<32x128xi32>
    %178 = arith.cmpi eq, %5, %177 : vector<32x128xi32>
    %cst_66 = arith.constant 0.000000e+00 : f32
    %179 = vector.broadcast %cst_66 : f32 to vector<32x128xf32>
    %180 = arith.select %178, %176, %179 : vector<32x128xi1>, vector<32x128xf32>
    %181 = arith.addf %173, %180 : vector<32x128xf32>
    %182 = arith.mulf %181, %181 : vector<32x128xf32>
    %cst_67 = arith.constant dense<0.000000e+00> : vector<128xf32>
    %183 = vector.multi_reduction <add>, %182, %cst_67 [0] : vector<32x128xf32> to vector<128xf32>
    %184 = vector.shape_cast %183 : vector<128xf32> to vector<1x128xf32>
    %185 = tpu.reciprocal %184 : vector<1x128xf32> -> vector<1x128xf32>
    %cst_68 = arith.constant 2.000000e+00 : f32
    %186 = vector.broadcast %cst_68 : f32 to vector<1x128xf32>
    %187 = arith.mulf %186, %185 : vector<1x128xf32>
    %c3_69 = arith.constant 3 : index
    %c0_70 = arith.constant 0 : index
    %c0_71 = arith.constant 0 : index
    %188 = vector.load %arg4[%c3_69, %c0_70, %c0_71] : memref<4x1x128xf32, #tpu.memory_space<vmem>>, vector<1x1x128xf32>
    %189 = vector.shape_cast %188 : vector<1x1x128xf32> to vector<1x128xf32>
    %190 = vector.shape_cast %187 : vector<1x128xf32> to vector<1x1x128xf32>
    tpu.vector_store %arg4[%c3_69, %c0_70, %c0_71], %190 {strides = array<i32>} : memref<4x1x128xf32, #tpu.memory_space<vmem>>, vector<1x1x128xf32>,
    %c3_72 = arith.constant 3 : index
    %c0_73 = arith.constant 0 : index
    %c0_74 = arith.constant 0 : index
    %191 = vector.load %arg3[%c3_72, %c0_73, %c0_74] : memref<4x32x128xf32, #tpu.memory_space<vmem>>, vector<1x32x128xf32>
    %192 = vector.shape_cast %191 : vector<1x32x128xf32> to vector<32x128xf32>
    %193 = vector.shape_cast %181 : vector<32x128xf32> to vector<1x32x128xf32>
    tpu.vector_store %arg3[%c3_72, %c0_73, %c0_74], %193 {strides = array<i32>} : memref<4x32x128xf32, #tpu.memory_space<vmem>>, vector<1x32x128xf32>,
    %194 = arith.cmpi eq, %0, %3 : vector<32x128xi32>
    %195 = arith.extui %194 : vector<32x128xi1> to vector<32x128xi32>
    %196 = arith.sitofp %195 : vector<32x128xi32> to vector<32x128xf32>
    %c0_75 = arith.constant 0 : index
    %c0_76 = arith.constant 0 : index
    %c0_77 = arith.constant 0 : index
    %197 = vector.load %arg3[%c0_75, %c0_76, %c0_77] : memref<4x32x128xf32, #tpu.memory_space<vmem>>, vector<1x32x128xf32>
    %198 = vector.shape_cast %197 : vector<1x32x128xf32> to vector<32x128xf32>
    %199 = arith.mulf %198, %196 : vector<32x128xf32>
    %cst_78 = arith.constant dense<0.000000e+00> : vector<128xf32>
    %200 = vector.multi_reduction <add>, %199, %cst_78 [0] : vector<32x128xf32> to vector<128xf32>
    %201 = vector.shape_cast %200 : vector<128xf32> to vector<1x128xf32>
    %c0_79 = arith.constant 0 : index
    %c0_80 = arith.constant 0 : index
    %c0_81 = arith.constant 0 : index
    %202 = vector.load %arg4[%c0_79, %c0_80, %c0_81] : memref<4x1x128xf32, #tpu.memory_space<vmem>>, vector<1x1x128xf32>
    %203 = vector.shape_cast %202 : vector<1x1x128xf32> to vector<1x128xf32>
    %204 = arith.mulf %203, %201 : vector<1x128xf32>
    %205 = vector.broadcast %204 : vector<1x128xf32> to vector<32x128xf32>
    %206 = arith.mulf %198, %205 : vector<32x128xf32>
    %207 = arith.subf %196, %206 : vector<32x128xf32>
    %c1_82 = arith.constant 1 : index
    %c0_83 = arith.constant 0 : index
    %c0_84 = arith.constant 0 : index
    %208 = vector.load %arg3[%c1_82, %c0_83, %c0_84] : memref<4x32x128xf32, #tpu.memory_space<vmem>>, vector<1x32x128xf32>
    %209 = vector.shape_cast %208 : vector<1x32x128xf32> to vector<32x128xf32>
    %210 = arith.mulf %209, %207 : vector<32x128xf32>
    %cst_85 = arith.constant dense<0.000000e+00> : vector<128xf32>
    %211 = vector.multi_reduction <add>, %210, %cst_85 [0] : vector<32x128xf32> to vector<128xf32>
    %212 = vector.shape_cast %211 : vector<128xf32> to vector<1x128xf32>
    %c1_86 = arith.constant 1 : index
    %c0_87 = arith.constant 0 : index
    %c0_88 = arith.constant 0 : index
    %213 = vector.load %arg4[%c1_86, %c0_87, %c0_88] : memref<4x1x128xf32, #tpu.memory_space<vmem>>, vector<1x1x128xf32>
    %214 = vector.shape_cast %213 : vector<1x1x128xf32> to vector<1x128xf32>
    %215 = arith.mulf %214, %212 : vector<1x128xf32>
    %216 = vector.broadcast %215 : vector<1x128xf32> to vector<32x128xf32>
    %217 = arith.mulf %209, %216 : vector<32x128xf32>
    %218 = arith.subf %207, %217 : vector<32x128xf32>
    %c2_89 = arith.constant 2 : index
    %c0_90 = arith.constant 0 : index
    %c0_91 = arith.constant 0 : index
    %219 = vector.load %arg3[%c2_89, %c0_90, %c0_91] : memref<4x32x128xf32, #tpu.memory_space<vmem>>, vector<1x32x128xf32>
    %220 = vector.shape_cast %219 : vector<1x32x128xf32> to vector<32x128xf32>
    %221 = arith.mulf %220, %218 : vector<32x128xf32>
    %cst_92 = arith.constant dense<0.000000e+00> : vector<128xf32>
    %222 = vector.multi_reduction <add>, %221, %cst_92 [0] : vector<32x128xf32> to vector<128xf32>
    %223 = vector.shape_cast %222 : vector<128xf32> to vector<1x128xf32>
    %c2_93 = arith.constant 2 : index
    %c0_94 = arith.constant 0 : index
    %c0_95 = arith.constant 0 : index
    %224 = vector.load %arg4[%c2_93, %c0_94, %c0_95] : memref<4x1x128xf32, #tpu.memory_space<vmem>>, vector<1x1x128xf32>
    %225 = vector.shape_cast %224 : vector<1x1x128xf32> to vector<1x128xf32>
    %226 = arith.mulf %225, %223 : vector<1x128xf32>
    %227 = vector.broadcast %226 : vector<1x128xf32> to vector<32x128xf32>
    %228 = arith.mulf %220, %227 : vector<32x128xf32>
    %229 = arith.subf %218, %228 : vector<32x128xf32>
    %c3_96 = arith.constant 3 : index
    %c0_97 = arith.constant 0 : index
    %c0_98 = arith.constant 0 : index
    %230 = vector.load %arg3[%c3_96, %c0_97, %c0_98] : memref<4x32x128xf32, #tpu.memory_space<vmem>>, vector<1x32x128xf32>
    %231 = vector.shape_cast %230 : vector<1x32x128xf32> to vector<32x128xf32>
    %232 = arith.mulf %231, %229 : vector<32x128xf32>
    %cst_99 = arith.constant dense<0.000000e+00> : vector<128xf32>
    %233 = vector.multi_reduction <add>, %232, %cst_99 [0] : vector<32x128xf32> to vector<128xf32>
    %234 = vector.shape_cast %233 : vector<128xf32> to vector<1x128xf32>
    %c3_100 = arith.constant 3 : index
    %c0_101 = arith.constant 0 : index
    %c0_102 = arith.constant 0 : index
    %235 = vector.load %arg4[%c3_100, %c0_101, %c0_102] : memref<4x1x128xf32, #tpu.memory_space<vmem>>, vector<1x1x128xf32>
    %236 = vector.shape_cast %235 : vector<1x1x128xf32> to vector<1x128xf32>
    %237 = arith.mulf %236, %234 : vector<1x128xf32>
    %238 = vector.broadcast %237 : vector<1x128xf32> to vector<32x128xf32>
    %239 = arith.mulf %231, %238 : vector<32x128xf32>
    %240 = arith.subf %229, %239 : vector<32x128xf32>
    %241 = vector.extract_strided_slice %240 {offsets = [0, 0], sizes = [32, 32], strides = [1, 1]} : vector<32x128xf32> to vector<32x32xf32>
    %c0_103 = arith.constant 0 : index
    %c0_104 = arith.constant 0 : index
    %c0_105 = arith.constant 0 : index
    %242 = vector.load %arg2[%c0_103, %c0_104, %c0_105] : memref<4x32x32xf32, #tpu.memory_space<vmem>>, vector<1x32x32xf32>
    %243 = vector.shape_cast %242 : vector<1x32x32xf32> to vector<32x32xf32>
    %244 = vector.shape_cast %241 : vector<32x32xf32> to vector<1x32x32xf32>
    tpu.vector_store %arg2[%c0_103, %c0_104, %c0_105], %244 {strides = array<i32>} : memref<4x32x32xf32, #tpu.memory_space<vmem>>, vector<1x32x32xf32>,
    %245 = vector.extract_strided_slice %240 {offsets = [0, 32], sizes = [32, 32], strides = [1, 1]} : vector<32x128xf32> to vector<32x32xf32>
    %c1_106 = arith.constant 1 : index
    %c0_107 = arith.constant 0 : index
    %c0_108 = arith.constant 0 : index
    %246 = vector.load %arg2[%c1_106, %c0_107, %c0_108] : memref<4x32x32xf32, #tpu.memory_space<vmem>>, vector<1x32x32xf32>
    %247 = vector.shape_cast %246 : vector<1x32x32xf32> to vector<32x32xf32>
    %248 = vector.shape_cast %245 : vector<32x32xf32> to vector<1x32x32xf32>
    tpu.vector_store %arg2[%c1_106, %c0_107, %c0_108], %248 {strides = array<i32>} : memref<4x32x32xf32, #tpu.memory_space<vmem>>, vector<1x32x32xf32>,
    %249 = vector.extract_strided_slice %240 {offsets = [0, 64], sizes = [32, 32], strides = [1, 1]} : vector<32x128xf32> to vector<32x32xf32>
    %c2_109 = arith.constant 2 : index
    %c0_110 = arith.constant 0 : index
    %c0_111 = arith.constant 0 : index
    %250 = vector.load %arg2[%c2_109, %c0_110, %c0_111] : memref<4x32x32xf32, #tpu.memory_space<vmem>>, vector<1x32x32xf32>
    %251 = vector.shape_cast %250 : vector<1x32x32xf32> to vector<32x32xf32>
    %252 = vector.shape_cast %249 : vector<32x32xf32> to vector<1x32x32xf32>
    tpu.vector_store %arg2[%c2_109, %c0_110, %c0_111], %252 {strides = array<i32>} : memref<4x32x32xf32, #tpu.memory_space<vmem>>, vector<1x32x32xf32>,
    %253 = vector.extract_strided_slice %240 {offsets = [0, 96], sizes = [32, 32], strides = [1, 1]} : vector<32x128xf32> to vector<32x32xf32>
    %c3_112 = arith.constant 3 : index
    %c0_113 = arith.constant 0 : index
    %c0_114 = arith.constant 0 : index
    %254 = vector.load %arg2[%c3_112, %c0_113, %c0_114] : memref<4x32x32xf32, #tpu.memory_space<vmem>>, vector<1x32x32xf32>
    %255 = vector.shape_cast %254 : vector<1x32x32xf32> to vector<32x32xf32>
    %256 = vector.shape_cast %253 : vector<32x32xf32> to vector<1x32x32xf32>
    tpu.vector_store %arg2[%c3_112, %c0_113, %c0_114], %256 {strides = array<i32>} : memref<4x32x32xf32, #tpu.memory_space<vmem>>, vector<1x32x32xf32>,
    return
  }
  func.func @transform_0(%arg0: i32) -> (i32, i32, i32, i32) {
    %c0_i32 = arith.constant 0 : i32
    %c0_i32_0 = arith.constant 0 : i32
    %c0_i32_1 = arith.constant 0 : i32
    %c0_i32_2 = arith.constant 0 : i32
    return %arg0, %c0_i32, %c0_i32_0, %c0_i32_1 : i32, i32, i32, i32
  }
  func.func @transform_1(%arg0: i32) -> (i32, i32, i32) {
    %c0_i32 = arith.constant 0 : i32
    %c0_i32_0 = arith.constant 0 : i32
    %c0_i32_1 = arith.constant 0 : i32
    return %arg0, %c0_i32, %c0_i32_0 : i32, i32, i32
  }
}

</mosaic_0001>

<llo_original>
// kernel: householder_per_head.1
$region0: #{householder_per_head.1}
  #allocation0 [shape = 'u32[]', space=smem, size = 0x4, offset = 0x4, fixed_abs, tag = 'smem constant byte address 0x4 - core index']
  #allocation1 [shape = 'u32[144,128]{1,0:T(1,128)}', space=vmem, size = 0x12000, scoped, tag = 'internal scratch']
  #allocation2 [shape = 'f32[4,32,128]{2,1,0:T(8,128)}', space=vmem, size = 0x10000, scoped, tag = 'scratch operand']
  #allocation3 [shape = 'f32[4,1,128]{2,1,0:T(1,128)}', space=vmem, size = 0x800, scoped, tag = 'scratch operand']
  %s0 = inlined_call_operand.vmem [shape: f32[1,4,32,4], index: 0, kind: input, shape index: {}]
  %s1 = inlined_call_operand.hbm [shape: f32[4,32,32], index: 1, kind: output, shape index: {}]
  %s2 = sld [smem:[#allocation0]]
  $region14: #{householder_per_head.1} parent=0
    _
  %s4 = ssub.s32 1, %s2
  %s5 = scalar_select 0, %s4, %s2
  $region1: #{householder_per_head.1} parent=0
    #allocation4 [shape = 'u8[65536]{0}', space=vmem, size = 0x10000, scoped, tag = 'output window, operand 0, single buffered']
    #allocation5 [shape = 's32[1]{0}', space=sflag, size = 0x4, scoped, tag = 'scoped memory for householder_per_head.1']
    %6 = vsyncpa [#allocation5], 0
    // Predicated region
    $region2: #{householder_per_head.1} parent=1 // pred_check
      _
    $region3: #{householder_per_head.1} parent=1 // pred_check_branch
      %8 = sbr.rel (0) target = $region5
    $region4: #{householder_per_head.1} parent=1 // pred_region
      _
    $region5: #{householder_per_head.1} parent=1 // pred_fallthru
      _
    %v9 = vlaneseq
    %v10 = vshrl.u32 %v9, 7
    %v11 = vadd.s32 %v10, 8
    %v12 = vadd.s32 %v10, 16
    %v13 = vadd.s32 %v10, 24
    %v14 = vlaneseq
    %v15 = vand.u32 %v14, 127
    %v16 = vand.u32 %v15, 31
    %v17 = vshra.s32 %v15, 5
    %v18 = vld [vmem:[%s0] sm:$0xff]
    %v19 = vld [vmem:[%s0 + $0x8] sm:$0xff]
    %v20 = vld [vmem:[%s0 + $0x10] sm:$0xff]
    %v21 = vld [vmem:[%s0 + $0x18] sm:$0xff]
    %23 = vset.pattern.permute.xlu0 0
    %24 = vperm.xlu0 %23, %v18
    %v25 = vpop.permute.xlu0 %24
    %28 = vset.pattern.permute.xlu0 0
    %29 = vperm.xlu0 %28, %v19
    %v30 = vpop.permute.xlu0 %29
    %33 = vset.pattern.permute.xlu0 0
    %34 = vperm.xlu0 %33, %v20
    %v35 = vpop.permute.xlu0 %34
    %38 = vset.pattern.permute.xlu0 0
    %39 = vperm.xlu0 %38, %v21
    %v40 = vpop.permute.xlu0 %39
    %vm42 = vcmp.eq.s32.totalorder %v17, 0
    %v43 = vsel %vm42, %v25, 0.0
    %v44 = vsel %vm42, %v30, 0.0
    %v45 = vsel %vm42, %v35, 0.0
    %v46 = vsel %vm42, %v40, 0.0
    %v47 = vadd.f32 %v43, 0.0
    %v48 = vadd.f32 %v44, 0.0
    %v49 = vadd.f32 %v45, 0.0
    %v50 = vadd.f32 %v46, 0.0
    %51 = vset.pattern.permute.xlu0 1
    %52 = vperm.xlu0 %51, %v18
    %v53 = vpop.permute.xlu0 %52
    %55 = vset.pattern.permute.xlu0 1
    %56 = vperm.xlu0 %55, %v19
    %v57 = vpop.permute.xlu0 %56
    %59 = vset.pattern.permute.xlu0 1
    %60 = vperm.xlu0 %59, %v20
    %v61 = vpop.permute.xlu0 %60
    %63 = vset.pattern.permute.xlu0 1
    %64 = vperm.xlu0 %63, %v21
    %v65 = vpop.permute.xlu0 %64
    %vm67 = vcmp.eq.s32.totalorder %v17, 1
    %v68 = vsel %vm67, %v53, 0.0
    %v69 = vsel %vm67, %v57, 0.0
    %v70 = vsel %vm67, %v61, 0.0
    %v71 = vsel %vm67, %v65, 0.0
    %v72 = vadd.f32 %v47, %v68
    %v73 = vadd.f32 %v48, %v69
    %v74 = vadd.f32 %v49, %v70
    %v75 = vadd.f32 %v50, %v71
    %76 = vset.pattern.permute.xlu0 2
    %77 = vperm.xlu0 %76, %v18
    %v78 = vpop.permute.xlu0 %77
    %80 = vset.pattern.permute.xlu0 2
    %81 = vperm.xlu0 %80, %v19
    %v82 = vpop.permute.xlu0 %81
    %84 = vset.pattern.permute.xlu0 2
    %85 = vperm.xlu0 %84, %v20
    %v86 = vpop.permute.xlu0 %85
    %88 = vset.pattern.permute.xlu0 2
    %89 = vperm.xlu0 %88, %v21
    %v90 = vpop.permute.xlu0 %89
    %vm92 = vcmp.eq.s32.totalorder %v17, 2
    %v93 = vsel %vm92, %v78, 0.0
    %v94 = vsel %vm92, %v82, 0.0
    %v95 = vsel %vm92, %v86, 0.0
    %v96 = vsel %vm92, %v90, 0.0
    %v97 = vadd.f32 %v72, %v93
    %v98 = vadd.f32 %v73, %v94
    %v99 = vadd.f32 %v74, %v95
    %v100 = vadd.f32 %v75, %v96
    %101 = vset.pattern.permute.xlu0 3
    %102 = vperm.xlu0 %101, %v18
    %v103 = vpop.permute.xlu0 %102
    %105 = vset.pattern.permute.xlu0 3
    %106 = vperm.xlu0 %105, %v19
    %v107 = vpop.permute.xlu0 %106
    %109 = vset.pattern.permute.xlu0 3
    %110 = vperm.xlu0 %109, %v20
    %v111 = vpop.permute.xlu0 %110
    %113 = vset.pattern.permute.xlu0 3
    %114 = vperm.xlu0 %113, %v21
    %v115 = vpop.permute.xlu0 %114
    %vm117 = vcmp.eq.s32.totalorder %v17, 3
    %v118 = vsel %vm117, %v103, 0.0
    %v119 = vsel %vm117, %v107, 0.0
    %v120 = vsel %vm117, %v111, 0.0
    %v121 = vsel %vm117, %v115, 0.0
    %v122 = vadd.f32 %v97, %v118
    %v123 = vadd.f32 %v98, %v119
    %v124 = vadd.f32 %v99, %v120
    %v125 = vadd.f32 %v100, %v121
    %v126 = vmul.f32 %v122, %v122
    %v127 = vmul.f32 %v123, %v123
    %v128 = vmul.f32 %v124, %v124
    %v129 = vmul.f32 %v125, %v125
    %v130 = vadd.f32 %v126, %v127
    %v131 = vadd.f32 %v130, %v128
    %v132 = vadd.f32 %v131, %v129
    %v133 = vrot.slane %v132, 4
    %v134 = vadd.f32 %v132, %v133
    %v135 = vrot.slane %v134, 2
    %v136 = vadd.f32 %v134, %v135
    %v137 = vrot.slane %v136, 1
    %v138 = vadd.f32 %v136, %v137
    %v139 = vrcp.pop %v138
    %v140 = vmul.f32 %v139, 2.0
    %141 = vst [vmem:[#allocation3] sm:$0x1] %v140
    %142 = vst [vmem:[#allocation2] sm:$0xff] %v122
    %143 = vst [vmem:[#allocation2 + $0x8] sm:$0xff] %v123
    %144 = vst [vmem:[#allocation2 + $0x10] sm:$0xff] %v124
    %145 = vst [vmem:[#allocation2 + $0x18] sm:$0xff] %v125
    %s146 = scalar_lea.vmem %s0, 32
    %v147 = vld [vmem:[%s146] sm:$0xff]
    %v148 = vld [vmem:[%s146 + $0x8] sm:$0xff]
    %v149 = vld [vmem:[%s146 + $0x10] sm:$0xff]
    %v150 = vld [vmem:[%s146 + $0x18] sm:$0xff]
    %152 = vset.pattern.permute.xlu0 0
    %153 = vperm.xlu0 %152, %v147
    %v154 = vpop.permute.xlu0 %153
    %157 = vset.pattern.permute.xlu0 0
    %158 = vperm.xlu0 %157, %v148
    %v159 = vpop.permute.xlu0 %158
    %162 = vset.pattern.permute.xlu0 0
    %163 = vperm.xlu0 %162, %v149
    %v164 = vpop.permute.xlu0 %163
    %167 = vset.pattern.permute.xlu0 0
    %168 = vperm.xlu0 %167, %v150
    %v169 = vpop.permute.xlu0 %168
    %v171 = vsel %vm42, %v154, 0.0
    %v172 = vsel %vm42, %v159, 0.0
    %v173 = vsel %vm42, %v164, 0.0
    %v174 = vsel %vm42, %v169, 0.0
    %v175 = vadd.f32 %v171, 0.0
    %v176 = vadd.f32 %v172, 0.0
    %v177 = vadd.f32 %v173, 0.0
    %v178 = vadd.f32 %v174, 0.0
    %179 = vset.pattern.permute.xlu0 1
    %180 = vperm.xlu0 %179, %v147
    %v181 = vpop.permute.xlu0 %180
    %183 = vset.pattern.permute.xlu0 1
    %184 = vperm.xlu0 %183, %v148
    %v185 = vpop.permute.xlu0 %184
    %187 = vset.pattern.permute.xlu0 1
    %188 = vperm.xlu0 %187, %v149
    %v189 = vpop.permute.xlu0 %188
    %191 = vset.pattern.permute.xlu0 1
    %192 = vperm.xlu0 %191, %v150
    %v193 = vpop.permute.xlu0 %192
    %v195 = vsel %vm67, %v181, 0.0
    %v196 = vsel %vm67, %v185, 0.0
    %v197 = vsel %vm67, %v189, 0.0
    %v198 = vsel %vm67, %v193, 0.0
    %v199 = vadd.f32 %v175, %v195
    %v200 = vadd.f32 %v176, %v196
    %v201 = vadd.f32 %v177, %v197
    %v202 = vadd.f32 %v178, %v198
    %203 = vset.pattern.permute.xlu0 2
    %204 = vperm.xlu0 %203, %v147
    %v205 = vpop.permute.xlu0 %204
    %207 = vset.pattern.permute.xlu0 2
    %208 = vperm.xlu0 %207, %v148
    %v209 = vpop.permute.xlu0 %208
    %211 = vset.pattern.permute.xlu0 2
    %212 = vperm.xlu0 %211, %v149
    %v213 = vpop.permute.xlu0 %212
    %215 = vset.pattern.permute.xlu0 2
    %216 = vperm.xlu0 %215, %v150
    %v217 = vpop.permute.xlu0 %216
    %v219 = vsel %vm92, %v205, 0.0
    %v220 = vsel %vm92, %v209, 0.0
    %v221 = vsel %vm92, %v213, 0.0
    %v222 = vsel %vm92, %v217, 0.0
    %v223 = vadd.f32 %v199, %v219
    %v224 = vadd.f32 %v200, %v220
    %v225 = vadd.f32 %v201, %v221
    %v226 = vadd.f32 %v202, %v222
    %227 = vset.pattern.permute.xlu0 3
    %228 = vperm.xlu0 %227, %v147
    %v229 = vpop.permute.xlu0 %228
    %231 = vset.pattern.permute.xlu0 3
    %232 = vperm.xlu0 %231, %v148
    %v233 = vpop.permute.xlu0 %232
    %235 = vset.pattern.permute.xlu0 3
    %236 = vperm.xlu0 %235, %v149
    %v237 = vpop.permute.xlu0 %236
    %239 = vset.pattern.permute.xlu0 3
    %240 = vperm.xlu0 %239, %v150
    %v241 = vpop.permute.xlu0 %240
    %v243 = vsel %vm117, %v229, 0.0
    %v244 = vsel %vm117, %v233, 0.0
    %v245 = vsel %vm117, %v237, 0.0
    %v246 = vsel %vm117, %v241, 0.0
    %v247 = vadd.f32 %v223, %v243
    %v248 = vadd.f32 %v224, %v244
    %v249 = vadd.f32 %v225, %v245
    %v250 = vadd.f32 %v226, %v246
    %v251 = vmul.f32 %v247, %v247
    %v252 = vmul.f32 %v248, %v248
    %v253 = vmul.f32 %v249, %v249
    %v254 = vmul.f32 %v250, %v250
    %v255 = vadd.f32 %v251, %v252
    %v256 = vadd.f32 %v255, %v253
    %v257 = vadd.f32 %v256, %v254
    %v258 = vrot.slane %v257, 4
    %v259 = vadd.f32 %v257, %v258
    %v260 = vrot.slane %v259, 2
    %v261 = vadd.f32 %v259, %v260
    %v262 = vrot.slane %v261, 1
    %v263 = vadd.f32 %v261, %v262
    %v264 = vrcp.pop %v263
    %v265 = vmul.f32 %v264, 2.0
    %s266 = scalar_lea.vmem [#allocation3], 1
    %267 = vst [vmem:[%s266] sm:$0x1] %v265
    %s268 = scalar_lea.vmem [#allocation2], 32
    %269 = vst [vmem:[%s268] sm:$0xff] %v247
    %270 = vst [vmem:[%s268 + $0x8] sm:$0xff] %v248
    %271 = vst [vmem:[%s268 + $0x10] sm:$0xff] %v249
    %272 = vst [vmem:[%s268 + $0x18] sm:$0xff] %v250
    %s273 = scalar_lea.vmem %s0, 64
    %v274 = vld [vmem:[%s273] sm:$0xff]
    %v275 = vld [vmem:[%s273 + $0x8] sm:$0xff]
    %v276 = vld [vmem:[%s273 + $0x10] sm:$0xff]
    %v277 = vld [vmem:[%s273 + $0x18] sm:$0xff]
    %279 = vset.pattern.permute.xlu0 0
    %280 = vperm.xlu0 %279, %v274
    %v281 = vpop.permute.xlu0 %280
    %284 = vset.pattern.permute.xlu0 0
    %285 = vperm.xlu0 %284, %v275
    %v286 = vpop.permute.xlu0 %285
    %289 = vset.pattern.permute.xlu0 0
    %290 = vperm.xlu0 %289, %v276
    %v291 = vpop.permute.xlu0 %290
    %294 = vset.pattern.permute.xlu0 0
    %295 = vperm.xlu0 %294, %v277
    %v296 = vpop.permute.xlu0 %295
    %v298 = vsel %vm42, %v281, 0.0
    %v299 = vsel %vm42, %v286, 0.0
    %v300 = vsel %vm42, %v291, 0.0
    %v301 = vsel %vm42, %v296, 0.0
    %v302 = vadd.f32 %v298, 0.0
    %v303 = vadd.f32 %v299, 0.0
    %v304 = vadd.f32 %v300, 0.0
    %v305 = vadd.f32 %v301, 0.0
    %306 = vset.pattern.permute.xlu0 1
    %307 = vperm.xlu0 %306, %v274
    %v308 = vpop.permute.xlu0 %307
    %310 = vset.pattern.permute.xlu0 1
    %311 = vperm.xlu0 %310, %v275
    %v312 = vpop.permute.xlu0 %311
    %314 = vset.pattern.permute.xlu0 1
    %315 = vperm.xlu0 %314, %v276
    %v316 = vpop.permute.xlu0 %315
    %318 = vset.pattern.permute.xlu0 1
    %319 = vperm.xlu0 %318, %v277
    %v320 = vpop.permute.xlu0 %319
    %v322 = vsel %vm67, %v308, 0.0
    %v323 = vsel %vm67, %v312, 0.0
    %v324 = vsel %vm67, %v316, 0.0
    %v325 = vsel %vm67, %v320, 0.0
    %v326 = vadd.f32 %v302, %v322
    %v327 = vadd.f32 %v303, %v323
    %v328 = vadd.f32 %v304, %v324
    %v329 = vadd.f32 %v305, %v325
    %330 = vset.pattern.permute.xlu0 2
    %331 = vperm.xlu0 %330, %v274
    %v332 = vpop.permute.xlu0 %331
    %334 = vset.pattern.permute.xlu0 2
    %335 = vperm.xlu0 %334, %v275
    %v336 = vpop.permute.xlu0 %335
    %338 = vset.pattern.permute.xlu0 2
    %339 = vperm.xlu0 %338, %v276
    %v340 = vpop.permute.xlu0 %339
    %342 = vset.pattern.permute.xlu0 2
    %343 = vperm.xlu0 %342, %v277
    %v344 = vpop.permute.xlu0 %343
    %v346 = vsel %vm92, %v332, 0.0
    %v347 = vsel %vm92, %v336, 0.0
    %v348 = vsel %vm92, %v340, 0.0
    %v349 = vsel %vm92, %v344, 0.0
    %v350 = vadd.f32 %v326, %v346
    %v351 = vadd.f32 %v327, %v347
    %v352 = vadd.f32 %v328, %v348
    %v353 = vadd.f32 %v329, %v349
    %354 = vset.pattern.permute.xlu0 3
    %355 = vperm.xlu0 %354, %v274
    %v356 = vpop.permute.xlu0 %355
    %358 = vset.pattern.permute.xlu0 3
    %359 = vperm.xlu0 %358, %v275
    %v360 = vpop.permute.xlu0 %359
    %362 = vset.pattern.permute.xlu0 3
    %363 = vperm.xlu0 %362, %v276
    %v364 = vpop.permute.xlu0 %363
    %366 = vset.pattern.permute.xlu0 3
    %367 = vperm.xlu0 %366, %v277
    %v368 = vpop.permute.xlu0 %367
    %v370 = vsel %vm117, %v356, 0.0
    %v371 = vsel %vm117, %v360, 0.0
    %v372 = vsel %vm117, %v364, 0.0
    %v373 = vsel %vm117, %v368, 0.0
    %v374 = vadd.f32 %v350, %v370
    %v375 = vadd.f32 %v351, %v371
    %v376 = vadd.f32 %v352, %v372
    %v377 = vadd.f32 %v353, %v373
    %v378 = vmul.f32 %v374, %v374
    %v379 = vmul.f32 %v375, %v375
    %v380 = vmul.f32 %v376, %v376
    %v381 = vmul.f32 %v377, %v377
    %v382 = vadd.f32 %v378, %v379
    %v383 = vadd.f32 %v382, %v380
    %v384 = vadd.f32 %v383, %v381
    %v385 = vrot.slane %v384, 4
    %v386 = vadd.f32 %v384, %v385
    %v387 = vrot.slane %v386, 2
    %v388 = vadd.f32 %v386, %v387
    %v389 = vrot.slane %v388, 1
    %v390 = vadd.f32 %v388, %v389
    %v391 = vrcp.pop %v390
    %v392 = vmul.f32 %v391, 2.0
    %s393 = scalar_lea.vmem [#allocation3], 2
    %394 = vst [vmem:[%s393] sm:$0x1] %v392
    %s395 = scalar_lea.vmem [#allocation2], 64
    %396 = vst [vmem:[%s395] sm:$0xff] %v374
    %397 = vst [vmem:[%s395 + $0x8] sm:$0xff] %v375
    %398 = vst [vmem:[%s395 + $0x10] sm:$0xff] %v376
    %399 = vst [vmem:[%s395 + $0x18] sm:$0xff] %v377
    %s400 = scalar_lea.vmem %s0, 96
    %v401 = vld [vmem:[%s400] sm:$0xff]
    %v402 = vld [vmem:[%s400 + $0x8] sm:$0xff]
    %v403 = vld [vmem:[%s400 + $0x10] sm:$0xff]
    %v404 = vld [vmem:[%s400 + $0x18] sm:$0xff]
    %406 = vset.pattern.permute.xlu0 0
    %407 = vperm.xlu0 %406, %v401
    %v408 = vpop.permute.xlu0 %407
    %411 = vset.pattern.permute.xlu0 0
    %412 = vperm.xlu0 %411, %v402
    %v413 = vpop.permute.xlu0 %412
    %416 = vset.pattern.permute.xlu0 0
    %417 = vperm.xlu0 %416, %v403
    %v418 = vpop.permute.xlu0 %417
    %421 = vset.pattern.permute.xlu0 0
    %422 = vperm.xlu0 %421, %v404
    %v423 = vpop.permute.xlu0 %422
    %v425 = vsel %vm42, %v408, 0.0
    %v426 = vsel %vm42, %v413, 0.0
    %v427 = vsel %vm42, %v418, 0.0
    %v428 = vsel %vm42, %v423, 0.0
    %v429 = vadd.f32 %v425, 0.0
    %v430 = vadd.f32 %v426, 0.0
    %v431 = vadd.f32 %v427, 0.0
    %v432 = vadd.f32 %v428, 0.0
    %433 = vset.pattern.permute.xlu0 1
    %434 = vperm.xlu0 %433, %v401
    %v435 = vpop.permute.xlu0 %434
    %437 = vset.pattern.permute.xlu0 1
    %438 = vperm.xlu0 %437, %v402
    %v439 = vpop.permute.xlu0 %438
    %441 = vset.pattern.permute.xlu0 1
    %442 = vperm.xlu0 %441, %v403
    %v443 = vpop.permute.xlu0 %442
    %445 = vset.pattern.permute.xlu0 1
    %446 = vperm.xlu0 %445, %v404
    %v447 = vpop.permute.xlu0 %446
    %v449 = vsel %vm67, %v435, 0.0
    %v450 = vsel %vm67, %v439, 0.0
    %v451 = vsel %vm67, %v443, 0.0
    %v452 = vsel %vm67, %v447, 0.0
    %v453 = vadd.f32 %v429, %v449
    %v454 = vadd.f32 %v430, %v450
    %v455 = vadd.f32 %v431, %v451
    %v456 = vadd.f32 %v432, %v452
    %457 = vset.pattern.permute.xlu0 2
    %458 = vperm.xlu0 %457, %v401
    %v459 = vpop.permute.xlu0 %458
    %461 = vset.pattern.permute.xlu0 2
    %462 = vperm.xlu0 %461, %v402
    %v463 = vpop.permute.xlu0 %462
    %465 = vset.pattern.permute.xlu0 2
    %466 = vperm.xlu0 %465, %v403
    %v467 = vpop.permute.xlu0 %466
    %469 = vset.pattern.permute.xlu0 2
    %470 = vperm.xlu0 %469, %v404
    %v471 = vpop.permute.xlu0 %470
    %v473 = vsel %vm92, %v459, 0.0
    %v474 = vsel %vm92, %v463, 0.0
    %v475 = vsel %vm92, %v467, 0.0
    %v476 = vsel %vm92, %v471, 0.0
    %v477 = vadd.f32 %v453, %v473
    %v478 = vadd.f32 %v454, %v474
    %v479 = vadd.f32 %v455, %v475
    %v480 = vadd.f32 %v456, %v476
    %481 = vset.pattern.permute.xlu0 3
    %482 = vperm.xlu0 %481, %v401
    %v483 = vpop.permute.xlu0 %482
    %485 = vset.pattern.permute.xlu0 3
    %486 = vperm.xlu0 %485, %v402
    %v487 = vpop.permute.xlu0 %486
    %489 = vset.pattern.permute.xlu0 3
    %490 = vperm.xlu0 %489, %v403
    %v491 = vpop.permute.xlu0 %490
    %493 = vset.pattern.permute.xlu0 3
    %494 = vperm.xlu0 %493, %v404
    %v495 = vpop.permute.xlu0 %494
    %v497 = vsel %vm117, %v483, 0.0
    %v498 = vsel %vm117, %v487, 0.0
    %v499 = vsel %vm117, %v491, 0.0
    %v500 = vsel %vm117, %v495, 0.0
    %v501 = vadd.f32 %v477, %v497
    %v502 = vadd.f32 %v478, %v498
    %v503 = vadd.f32 %v479, %v499
    %v504 = vadd.f32 %v480, %v500
    %v505 = vmul.f32 %v501, %v501
    %v506 = vmul.f32 %v502, %v502
    %v507 = vmul.f32 %v503, %v503
    %v508 = vmul.f32 %v504, %v504
    %v509 = vadd.f32 %v505, %v506
    %v510 = vadd.f32 %v509, %v507
    %v511 = vadd.f32 %v510, %v508
    %v512 = vrot.slane %v511, 4
    %v513 = vadd.f32 %v511, %v512
    %v514 = vrot.slane %v513, 2
    %v515 = vadd.f32 %v513, %v514
    %v516 = vrot.slane %v515, 1
    %v517 = vadd.f32 %v515, %v516
    %v518 = vrcp.pop %v517
    %v519 = vmul.f32 %v518, 2.0
    %s520 = scalar_lea.vmem [#allocation3], 3
    %521 = vst [vmem:[%s520] sm:$0x1] %v519
    %s522 = scalar_lea.vmem [#allocation2], 96
    %523 = vst [vmem:[%s522] sm:$0xff] %v501
    %524 = vst [vmem:[%s522 + $0x8] sm:$0xff] %v502
    %525 = vst [vmem:[%s522 + $0x10] sm:$0xff] %v503
    %526 = vst [vmem:[%s522 + $0x18] sm:$0xff] %v504
    %vm527 = vcmp.eq.s32.totalorder %v10, %v16
    %vm528 = vcmp.eq.s32.totalorder %v11, %v16
    %vm529 = vcmp.eq.s32.totalorder %v12, %v16
    %vm530 = vcmp.eq.s32.totalorder %v13, %v16
    %v531 = vsel %vm527, 1, 0
    %v532 = vsel %vm528, 1, 0
    %v533 = vsel %vm529, 1, 0
    %v534 = vsel %vm530, 1, 0
    %v535 = vcvt.s32.f32 %v531
    %v536 = vcvt.s32.f32 %v532
    %v537 = vcvt.s32.f32 %v533
    %v538 = vcvt.s32.f32 %v534
    %v539 = vld [vmem:[#allocation2] sm:$0xff]
    %v540 = vld [vmem:[#allocation2 + $0x8] sm:$0xff]
    %v541 = vld [vmem:[#allocation2 + $0x10] sm:$0xff]
    %v542 = vld [vmem:[#allocation2 + $0x18] sm:$0xff]
    %v543 = vmul.f32 %v539, %v535
    %v544 = vmul.f32 %v540, %v536
    %v545 = vmul.f32 %v541, %v537
    %v546 = vmul.f32 %v542, %v538
    %v547 = vadd.f32 %v543, %v544
    %v548 = vadd.f32 %v547, %v545
    %v549 = vadd.f32 %v548, %v546
    %v550 = vrot.slane %v549, 4
    %v551 = vadd.f32 %v549, %v550
    %v552 = vrot.slane %v551, 2
    %v553 = vadd.f32 %v551, %v552
    %v554 = vrot.slane %v553, 1
    %v555 = vadd.f32 %v553, %v554
    %v556 = vld [vmem:[#allocation3] sm:$0x1]
    %v557 = vmul.f32 %v556, %v555
    %v559 = vlaneseq
    %v560 = vshrl.u32 %v559, 7
    %v561 = vsub.s32 0, %v560
    %v562 = vrot.slane %v557, %v561
    %v564 = vmul.f32 %v539, %v562
    %v565 = vmul.f32 %v540, %v562
    %v566 = vmul.f32 %v541, %v562
    %v567 = vmul.f32 %v542, %v562
    %v568 = vsub.f32 %v535, %v564
    %v569 = vsub.f32 %v536, %v565
    %v570 = vsub.f32 %v537, %v566
    %v571 = vsub.f32 %v538, %v567
    %v572 = vld [vmem:[%s268] sm:$0xff]
    %v573 = vld [vmem:[%s268 + $0x8] sm:$0xff]
    %v574 = vld [vmem:[%s268 + $0x10] sm:$0xff]
    %v575 = vld [vmem:[%s268 + $0x18] sm:$0xff]
    %v576 = vmul.f32 %v572, %v568
    %v577 = vmul.f32 %v573, %v569
    %v578 = vmul.f32 %v574, %v570
    %v579 = vmul.f32 %v575, %v571
    %v580 = vadd.f32 %v576, %v577
    %v581 = vadd.f32 %v580, %v578
    %v582 = vadd.f32 %v581, %v579
    %v583 = vrot.slane %v582, 4
    %v584 = vadd.f32 %v582, %v583
    %v585 = vrot.slane %v584, 2
    %v586 = vadd.f32 %v584, %v585
    %v587 = vrot.slane %v586, 1
    %v588 = vadd.f32 %v586, %v587
    %v589 = vld [vmem:[%s266] sm:$0x1]
    %v590 = vmul.f32 %v589, %v588
    %v592 = vlaneseq
    %v593 = vshrl.u32 %v592, 7
    %v594 = vsub.s32 0, %v593
    %v595 = vrot.slane %v590, %v594
    %v597 = vmul.f32 %v572, %v595
    %v598 = vmul.f32 %v573, %v595
    %v599 = vmul.f32 %v574, %v595
    %v600 = vmul.f32 %v575, %v595
    %v601 = vsub.f32 %v568, %v597
    %v602 = vsub.f32 %v569, %v598
    %v603 = vsub.f32 %v570, %v599
    %v604 = vsub.f32 %v571, %v600
    %v605 = vld [vmem:[%s395] sm:$0xff]
    %v606 = vld [vmem:[%s395 + $0x8] sm:$0xff]
    %v607 = vld [vmem:[%s395 + $0x10] sm:$0xff]
    %v608 = vld [vmem:[%s395 + $0x18] sm:$0xff]
    %v609 = vmul.f32 %v605, %v601
    %v610 = vmul.f32 %v606, %v602
    %v611 = vmul.f32 %v607, %v603
    %v612 = vmul.f32 %v608, %v604
    %v613 = vadd.f32 %v609, %v610
    %v614 = vadd.f32 %v613, %v611
    %v615 = vadd.f32 %v614, %v612
    %v616 = vrot.slane %v615, 4
    %v617 = vadd.f32 %v615, %v616
    %v618 = vrot.slane %v617, 2
    %v619 = vadd.f32 %v617, %v618
    %v620 = vrot.slane %v619, 1
    %v621 = vadd.f32 %v619, %v620
    %v622 = vld [vmem:[%s393] sm:$0x1]
    %v623 = vmul.f32 %v622, %v621
    %v625 = vlaneseq
    %v626 = vshrl.u32 %v625, 7
    %v627 = vsub.s32 0, %v626
    %v628 = vrot.slane %v623, %v627
    %v630 = vmul.f32 %v605, %v628
    %v631 = vmul.f32 %v606, %v628
    %v632 = vmul.f32 %v607, %v628
    %v633 = vmul.f32 %v608, %v628
    %v634 = vsub.f32 %v601, %v630
    %v635 = vsub.f32 %v602, %v631
    %v636 = vsub.f32 %v603, %v632
    %v637 = vsub.f32 %v604, %v633
    %v638 = vld [vmem:[%s522] sm:$0xff]
    %v639 = vld [vmem:[%s522 + $0x8] sm:$0xff]
    %v640 = vld [vmem:[%s522 + $0x10] sm:$0xff]
    %v641 = vld [vmem:[%s522 + $0x18] sm:$0xff]
    %v642 = vmul.f32 %v638, %v634
    %v643 = vmul.f32 %v639, %v635
    %v644 = vmul.f32 %v640, %v636
    %v645 = vmul.f32 %v641, %v637
    %v646 = vadd.f32 %v642, %v643
    %v647 = vadd.f32 %v646, %v644
    %v648 = vadd.f32 %v647, %v645
    %v649 = vrot.slane %v648, 4
    %v650 = vadd.f32 %v648, %v649
    %v651 = vrot.slane %v650, 2
    %v652 = vadd.f32 %v650, %v651
    %v653 = vrot.slane %v652, 1
    %v654 = vadd.f32 %v652, %v653
    %v655 = vld [vmem:[%s520] sm:$0x1]
    %v656 = vmul.f32 %v655, %v654
    %v658 = vlaneseq
    %v659 = vshrl.u32 %v658, 7
    %v660 = vsub.s32 0, %v659
    %v661 = vrot.slane %v656, %v660
    %v663 = vmul.f32 %v638, %v661
    %v664 = vmul.f32 %v639, %v661
    %v665 = vmul.f32 %v640, %v661
    %v666 = vmul.f32 %v641, %v661
    %v667 = vsub.f32 %v634, %v663
    %v668 = vsub.f32 %v635, %v664
    %v669 = vsub.f32 %v636, %v665
    %v670 = vsub.f32 %v637, %v666
    %vm671 = vcmask 261120
    %672 = vst.msk [vmem:[#allocation4] sm:$0xff] %vm671, %v667
    %673 = vst.msk [vmem:[#allocation4 + $0x8] sm:$0xff] %vm671, %v668
    %674 = vst.msk [vmem:[#allocation4 + $0x10] sm:$0xff] %vm671, %v669
    %675 = vst.msk [vmem:[#allocation4 + $0x18] sm:$0xff] %vm671, %v670
    %680 = vrot.lane.b32.xlu0 %v667, 96
    %v681 = vpop.permute.xlu0 %680
    %682 = vrot.lane.b32.xlu0 %v668, 96
    %v683 = vpop.permute.xlu0 %682
    %684 = vrot.lane.b32.xlu0 %v669, 96
    %v685 = vpop.permute.xlu0 %684
    %686 = vrot.lane.b32.xlu0 %v670, 96
    %v687 = vpop.permute.xlu0 %686
    %s692 = scalar_lea.vmem [#allocation4], 32
    %693 = vst.msk [vmem:[%s692] sm:$0xff] %vm671, %v681
    %694 = vst.msk [vmem:[%s692 + $0x8] sm:$0xff] %vm671, %v683
    %695 = vst.msk [vmem:[%s692 + $0x10] sm:$0xff] %vm671, %v685
    %696 = vst.msk [vmem:[%s692 + $0x18] sm:$0xff] %vm671, %v687
    %697 = vrot.lane.b32.xlu0 %v667, 64
    %v698 = vpop.permute.xlu0 %697
    %699 = vrot.lane.b32.xlu0 %v668, 64
    %v700 = vpop.permute.xlu0 %699
    %701 = vrot.lane.b32.xlu0 %v669, 64
    %v702 = vpop.permute.xlu0 %701
    %703 = vrot.lane.b32.xlu0 %v670, 64
    %v704 = vpop.permute.xlu0 %703
    %s709 = scalar_lea.vmem [#allocation4], 64
    %710 = vst.msk [vmem:[%s709] sm:$0xff] %vm671, %v698
    %711 = vst.msk [vmem:[%s709 + $0x8] sm:$0xff] %vm671, %v700
    %712 = vst.msk [vmem:[%s709 + $0x10] sm:$0xff] %vm671, %v702
    %713 = vst.msk [vmem:[%s709 + $0x18] sm:$0xff] %vm671, %v704
    %714 = vrot.lane.b32.xlu0 %v667, 32
    %v715 = vpop.permute.xlu0 %714
    %716 = vrot.lane.b32.xlu0 %v668, 32
    %v717 = vpop.permute.xlu0 %716
    %718 = vrot.lane.b32.xlu0 %v669, 32
    %v719 = vpop.permute.xlu0 %718
    %720 = vrot.lane.b32.xlu0 %v670, 32
    %v721 = vpop.permute.xlu0 %720
    %s726 = scalar_lea.vmem [#allocation4], 96
    %727 = vst.msk [vmem:[%s726] sm:$0xff] %vm671, %v715
    %728 = vst.msk [vmem:[%s726 + $0x8] sm:$0xff] %vm671, %v717
    %729 = vst.msk [vmem:[%s726 + $0x10] sm:$0xff] %vm671, %v719
    %730 = vst.msk [vmem:[%s726 + $0x18] sm:$0xff] %vm671, %v721
    // Predicated region
    $region6: #{householder_per_head.1} parent=1 // pred_check
      _
    $region7: #{householder_per_head.1} parent=1 // pred_check_branch
      %732 = sbr.rel (0) target = $region9
    $region8: #{householder_per_head.1} parent=1 // pred_region
      %s734 = ssub.s32 2048, 2048
      %735 = vsyncadd [#allocation5], %s734
      %s736 = sshll.u32 [#allocation4], 4
      %s737 = int_to_ptr.vmem [resolvable:$true] %s736
      %742 = dma.vmem_to_hbm [thread:$0]  %s737, 2048, %s1, [#allocation5], 128, 128, 8
    $region9: #{householder_per_head.1} parent=1 // pred_fallthru
      _
    // Predicated region
    $region10: #{householder_per_head.1} parent=1 // pred_check
      _
    $region11: #{householder_per_head.1} parent=1 // pred_check_branch
      %744 = sbr.rel (0) target = $region13
    $region12: #{householder_per_head.1} parent=1 // pred_region
      %745 = dma.done [#allocation5], 2048
    $region13: #{householder_per_head.1} parent=1 // pred_fallthru
      _
    %746 = vsyncpa [#allocation5], 1

</llo_original>
